<compile_context>
chip_gen: v5e
topology: v5e:2x2
jax: 0.10.0
libtpu: 0.0.40
codegen_flags: <defaults>
</compile_context>

<pallas_src>
import jax
import jax.numpy as jnp
import numpy as np
from jax.experimental import pallas as pl
from jax.experimental.pallas import tpu as pltpu


def _round_up(n, m):
    return ((n + m - 1) // m) * m


def qnetwork_kernel(x_ref, a_ref, w1x_ref, w1a_ref, b1_ref, w2_ref, b2_ref,
                    w3_ref, b3_ref, out_ref):
    mm_dtype = w1x_ref.dtype
    # fc1 as split-W: x @ W1[:obs] + a @ W1[obs:]  ==  cat([x, a]) @ W1.
    # Cast activations to the matmul dtype on-VPU; accumulate in f32.
    h1 = (jnp.dot(x_ref[...].astype(mm_dtype), w1x_ref[...],
                  preferred_element_type=jnp.float32)
          + jnp.dot(a_ref[...].astype(mm_dtype), w1a_ref[...],
                    preferred_element_type=jnp.float32)
          + b1_ref[...])
    h1 = jnp.maximum(h1, 0.0)                                   # ReLU (f32)
    # fc2
    h2 = (jnp.dot(h1.astype(w2_ref.dtype), w2_ref[...],
                  preferred_element_type=jnp.float32) + b2_ref[...])
    h2 = jnp.maximum(h2, 0.0)                                   # ReLU (f32)
    # fc3 (N=1): VPU multiply + XLU lane reduce (no lane-sparse MXU matmul).
    q = jnp.sum(h2 * w3_ref[...], axis=-1, keepdims=True) + b3_ref[...]  # (tb, 1)
    # Lane-dense store: transpose the (tb, 1) column to a (1, tb) row (XLU).
    out_ref[0] = q.T.astype(out_ref.dtype)                      # (1, tb)


def qnetwork_forward(x, a, params, *, block_b=2048):
    """x: [B, obs_dim] f32, a: [B, act_dim] f32 -> [B, 1] f32."""
    w1x, w1a, b1, w2, b2, w3, b3 = params
    B = x.shape[0]
    obs_dim = x.shape[1]
    act_dim = a.shape[1]
    hidden = w2.shape[0]

    # Tiny batches: pad to one full sublane (cheap; avoids sub-8 batch tiles).
    Bp = B
    if Bp < 8:
        x = jnp.pad(x, ((0, 8 - Bp), (0, 0)))
        a = jnp.pad(a, ((0, 8 - Bp), (0, 0)))
        Bp = 8

    # Batch tile: as large as block_b allows (step-overhead amortisation).
    tb = min(block_b, _round_up(Bp, 8))
    # v7x: if the whole batch fits one tile but is big enough to split, halve
    # the tile so the "parallel" grid has 2 steps (one per TensorCore).
    if Bp > 256 and pl.cdiv(Bp, tb) < 2:
        tb = _round_up(pl.cdiv(Bp, 2), 8)
    grid_b = pl.cdiv(Bp, tb)   # ragged last block handled by Pallas

    flops = 2 * grid_b * tb * ((obs_dim + act_dim) * hidden
                               + hidden * hidden + hidden)
    bytes_accessed = int(
        x.size * x.dtype.itemsize + a.size * a.dtype.itemsize
        + sum(p.size * p.dtype.itemsize for p in (w1x, w1a, b1, w2, b2, w3, b3))
        + grid_b * tb * 4)

    out = pl.pallas_call(
        qnetwork_kernel,
        out_shape=jax.ShapeDtypeStruct((grid_b, 1, tb), jnp.float32),
        grid_spec=pltpu.PrefetchScalarGridSpec(
            num_scalar_prefetch=0,
            grid=(grid_b,),
            in_specs=[
                pl.BlockSpec((tb, obs_dim), lambda i: (i, 0)),   # x tile
                pl.BlockSpec((tb, act_dim), lambda i: (i, 0)),   # a tile
                pl.BlockSpec(w1x.shape, lambda i: (0, 0)),       # fc1 W (x rows)
                pl.BlockSpec(w1a.shape, lambda i: (0, 0)),       # fc1 W (a rows)
                pl.BlockSpec(b1.shape, lambda i: (0, 0)),        # fc1 bias
                pl.BlockSpec(w2.shape, lambda i: (0, 0)),        # fc2 W
                pl.BlockSpec(b2.shape, lambda i: (0, 0)),        # fc2 bias
                pl.BlockSpec(w3.shape, lambda i: (0, 0)),        # fc3 W row (1, H)
                pl.BlockSpec(b3.shape, lambda i: (0, 0)),        # fc3 bias (1, 1)
            ],
            out_specs=pl.BlockSpec((1, 1, tb), lambda i: (i, 0, 0)),
        ),
        compiler_params=pltpu.CompilerParams(
            dimension_semantics=("parallel",)),
        cost_estimate=pl.CostEstimate(
            flops=flops, transcendentals=0, bytes_accessed=bytes_accessed),
    )(x, a, w1x, w1a, b1, w2, b2, w3, b3)

    return out.reshape(grid_b * tb, 1)[:B]


def init_linear(key, fan_in, fan_out):
    """PyTorch nn.Linear default init: U(-1/sqrt(fan_in), 1/sqrt(fan_in)).
    Returns weight as [fan_in, fan_out] (transposed for x @ W)."""
    kw, kb = jax.random.split(key)
    bound = 1.0 / float(np.sqrt(fan_in))
    w = jax.random.uniform(kw, (fan_in, fan_out), jnp.float32, -bound, bound)
    b = jax.random.uniform(kb, (1, fan_out), jnp.float32, -bound, bound)
    return w, b


def make_params(key, obs_dim, act_dim, hidden=256, matmul_dtype=jnp.bfloat16):
    """Returns (kernel_params, raw_f32_params)."""
    k1, k2, k3 = jax.random.split(key, 3)
    w1, b1 = init_linear(k1, obs_dim + act_dim, hidden)   # fc1
    w2, b2 = init_linear(k2, hidden, hidden)              # fc2
    w3, b3 = init_linear(k3, hidden, 1)                   # fc3
    params = (
        w1[:obs_dim].astype(matmul_dtype),                # fc1 W rows for x
        w1[obs_dim:].astype(matmul_dtype),                # fc1 W rows for a
        b1,                                               # fc1 bias (f32)
        w2.astype(matmul_dtype), b2,                      # fc2
        w3.T.astype(jnp.float32),                         # fc3 as (1, H) row, f32
        b3.reshape(1, 1),                                 # fc3 bias scalar
    )
    return params, (w1, b1, w2, b2, w3, b3)


def _reference_f32(x, a, raw):
    w1, b1, w2, b2, w3, b3 = raw
    xa = jnp.concatenate([x, a], axis=1)
    h = jnp.maximum(xa @ w1 + b1, 0.0)
    h = jnp.maximum(h @ w2 + b2, 0.0)
    return h @ w3 + b3


def _reference_matched(x, a, params):
    """Same math as the kernel (bf16 matmul operands, f32 accum), plain JAX."""
    w1x, w1a, b1, w2, b2, w3, b3 = params
    h = (jnp.dot(x.astype(w1x.dtype), w1x, preferred_element_type=jnp.float32)
         + jnp.dot(a.astype(w1a.dtype), w1a, preferred_element_type=jnp.float32)
         + b1)
    h = jnp.maximum(h, 0.0)
    h = jnp.maximum(jnp.dot(h.astype(w2.dtype), w2,
                            preferred_element_type=jnp.float32) + b2, 0.0)
    return jnp.sum(h * w3, axis=-1, keepdims=True) + b3


if __name__ == "__main__":
    obs_dim, act_dim, hidden = 16, 8, 256

    key = jax.random.PRNGKey(0)
    kparams, kx, ka, kx2, ka2 = jax.random.split(key, 5)
    params, raw = make_params(kparams, obs_dim, act_dim, hidden,
                              matmul_dtype=jnp.bfloat16)

    # Small batch: single grid step, tile shrunk to the 8-padded batch.
    batch = 8
    x = jax.random.normal(kx, (batch, obs_dim), jnp.float32)
    a = jax.random.normal(ka, (batch, act_dim), jnp.float32)
    q = jax.block_until_ready(qnetwork_forward(x, a, params))
    assert q.shape == (batch, 1)
    np.testing.assert_allclose(np.asarray(q),
                               np.asarray(_reference_matched(x, a, params)),
                               rtol=1e-3, atol=1e-3)
    np.testing.assert_allclose(np.asarray(q),
                               np.asarray(_reference_f32(x, a, raw)),
                               rtol=5e-2, atol=5e-2)

    # Larger batch: exercises the 2-step parallel grid and the ragged last tile.
    batch2 = 300
    x2 = jax.random.normal(kx2, (batch2, obs_dim), jnp.float32)
    a2 = jax.random.normal(ka2, (batch2, act_dim), jnp.float32)
    q2 = jax.block_until_ready(qnetwork_forward(x2, a2, params))
    assert q2.shape == (batch2, 1)
    np.testing.assert_allclose(np.asarray(q2),
                               np.asarray(_reference_matched(x2, a2, params)),
                               rtol=1e-3, atol=1e-3)
    np.testing.assert_allclose(np.asarray(q2),
                               np.asarray(_reference_f32(x2, a2, raw)),
                               rtol=5e-2, atol=5e-2)

    print("KERNEL_OK")
</pallas_src>

<mosaic_0001>
module attributes {stable_mosaic.version = 11 : i64} {
  func.func @qnetwork_kernel(%arg0: i32, %arg1: memref<8x16xf32, #tpu.memory_space<vmem>>, %arg2: memref<8x8xf32, #tpu.memory_space<vmem>>, %arg3: memref<16x256xbf16, #tpu.memory_space<vmem>>, %arg4: memref<8x256xbf16, #tpu.memory_space<vmem>>, %arg5: memref<1x256xf32, #tpu.memory_space<vmem>>, %arg6: memref<256x256xbf16, #tpu.memory_space<vmem>>, %arg7: memref<1x256xf32, #tpu.memory_space<vmem>>, %arg8: memref<1x256xf32, #tpu.memory_space<vmem>>, %arg9: memref<1x1xf32, #tpu.memory_space<vmem>>, %arg10: memref<1x1x8xf32, #tpu.memory_space<vmem>>) attributes {dimension_semantics = [#tpu.dimension_semantics<parallel>], iteration_bounds = array<i64: 1>, scalar_prefetch = 0 : i64, scratch_operands = 0 : i64, tpu.core_type = #tpu.core_type<tc>, window_params = [{transform_indices = @transform_0, window_bounds = array<i64: 8, 16>}, {transform_indices = @transform_1, window_bounds = array<i64: 8, 8>}, {pipeline_mode = #tpu.pipeline_mode<synchronous>, transform_indices = @transform_2, window_bounds = array<i64: 16, 256>}, {pipeline_mode = #tpu.pipeline_mode<synchronous>, transform_indices = @transform_3, window_bounds = array<i64: 8, 256>}, {pipeline_mode = #tpu.pipeline_mode<synchronous>, transform_indices = @transform_4, window_bounds = array<i64: 1, 256>}, {pipeline_mode = #tpu.pipeline_mode<synchronous>, transform_indices = @transform_5, window_bounds = array<i64: 256, 256>}, {pipeline_mode = #tpu.pipeline_mode<synchronous>, transform_indices = @transform_6, window_bounds = array<i64: 1, 256>}, {pipeline_mode = #tpu.pipeline_mode<synchronous>, transform_indices = @transform_7, window_bounds = array<i64: 1, 256>}, {pipeline_mode = #tpu.pipeline_mode<synchronous>, transform_indices = @transform_8, window_bounds = array<i64: 1, 1>}, {transform_indices = @transform_9, window_bounds = array<i64: 1, 1, 8>}]} {
    %c0 = arith.constant 0 : index
    %c0_0 = arith.constant 0 : index
    %0 = vector.load %arg1[%c0, %c0_0] : memref<8x16xf32, #tpu.memory_space<vmem>>, vector<8x16xf32>
    %1 = arith.truncf %0 : vector<8x16xf32> to vector<8x16xbf16>
    %c0_1 = arith.constant 0 : index
    %c0_2 = arith.constant 0 : index
    %2 = vector.load %arg3[%c0_1, %c0_2] : memref<16x256xbf16, #tpu.memory_space<vmem>>, vector<16x256xbf16>
    %cst = arith.constant dense<0.000000e+00> : vector<8x256xf32>
    %3 = tpu.matmul %1, %2, %cst {dimension_numbers = #tpu.dot_dimension_numbers<[1], [0], [0], [1], [0, 0, 1, 1], [], []>} : vector<8x16xbf16>, vector<16x256xbf16>, vector<8x256xf32> -> vector<8x256xf32>
    %c0_3 = arith.constant 0 : index
    %c0_4 = arith.constant 0 : index
    %4 = vector.load %arg2[%c0_3, %c0_4] : memref<8x8xf32, #tpu.memory_space<vmem>>, vector<8x8xf32>
    %5 = arith.truncf %4 : vector<8x8xf32> to vector<8x8xbf16>
    %c0_5 = arith.constant 0 : index
    %c0_6 = arith.constant 0 : index
    %6 = vector.load %arg4[%c0_5, %c0_6] : memref<8x256xbf16, #tpu.memory_space<vmem>>, vector<8x256xbf16>
    %cst_7 = arith.constant dense<0.000000e+00> : vector<8x256xf32>
    %7 = tpu.matmul %5, %6, %cst_7 {dimension_numbers = #tpu.dot_dimension_numbers<[1], [0], [0], [1], [0, 0, 1, 1], [], []>} : vector<8x8xbf16>, vector<8x256xbf16>, vector<8x256xf32> -> vector<8x256xf32>
    %8 = arith.addf %3, %7 : vector<8x256xf32>
    %c0_8 = arith.constant 0 : index
    %c0_9 = arith.constant 0 : index
    %9 = vector.load %arg5[%c0_8, %c0_9] : memref<1x256xf32, #tpu.memory_space<vmem>>, vector<1x256xf32>
    %10 = vector.broadcast %9 : vector<1x256xf32> to vector<8x256xf32>
    %11 = arith.addf %8, %10 : vector<8x256xf32>
    %cst_10 = arith.constant 0.000000e+00 : f32
    %12 = vector.broadcast %cst_10 : f32 to vector<8x256xf32>
    %13 = arith.maximumf %11, %12 : vector<8x256xf32>
    %14 = arith.truncf %13 : vector<8x256xf32> to vector<8x256xbf16>
    %c0_11 = arith.constant 0 : index
    %c0_12 = arith.constant 0 : index
    %15 = vector.load %arg6[%c0_11, %c0_12] : memref<256x256xbf16, #tpu.memory_space<vmem>>, vector<256x256xbf16>
    %cst_13 = arith.constant dense<0.000000e+00> : vector<8x256xf32>
    %16 = tpu.matmul %14, %15, %cst_13 {dimension_numbers = #tpu.dot_dimension_numbers<[1], [0], [0], [1], [0, 0, 1, 1], [], []>} : vector<8x256xbf16>, vector<256x256xbf16>, vector<8x256xf32> -> vector<8x256xf32>
    %c0_14 = arith.constant 0 : index
    %c0_15 = arith.constant 0 : index
    %17 = vector.load %arg7[%c0_14, %c0_15] : memref<1x256xf32, #tpu.memory_space<vmem>>, vector<1x256xf32>
    %18 = vector.broadcast %17 : vector<1x256xf32> to vector<8x256xf32>
    %19 = arith.addf %16, %18 : vector<8x256xf32>
    %cst_16 = arith.constant 0.000000e+00 : f32
    %20 = vector.broadcast %cst_16 : f32 to vector<8x256xf32>
    %21 = arith.maximumf %19, %20 : vector<8x256xf32>
    %c0_17 = arith.constant 0 : index
    %c0_18 = arith.constant 0 : index
    %22 = vector.load %arg8[%c0_17, %c0_18] : memref<1x256xf32, #tpu.memory_space<vmem>>, vector<1x256xf32>
    %23 = vector.broadcast %22 : vector<1x256xf32> to vector<8x256xf32>
    %24 = arith.mulf %21, %23 : vector<8x256xf32>
    %cst_19 = arith.constant dense<0.000000e+00> : vector<8xf32>
    %25 = vector.multi_reduction <add>, %24, %cst_19 [1] : vector<8x256xf32> to vector<8xf32>
    %26 = vector.shape_cast %25 : vector<8xf32> to vector<8x1xf32>
    %c0_20 = arith.constant 0 : index
    %c0_21 = arith.constant 0 : index
    %27 = vector.load %arg9[%c0_20, %c0_21] : memref<1x1xf32, #tpu.memory_space<vmem>>, vector<1x1xf32>
    %28 = vector.broadcast %27 : vector<1x1xf32> to vector<8x1xf32>
    %29 = arith.addf %26, %28 : vector<8x1xf32>
    %30 = tpu.transpose %29, [1, 0] : vector<8x1xf32> -> vector<1x8xf32>
    %c0_22 = arith.constant 0 : index
    %c0_23 = arith.constant 0 : index
    %c0_24 = arith.constant 0 : index
    %31 = vector.load %arg10[%c0_22, %c0_23, %c0_24] : memref<1x1x8xf32, #tpu.memory_space<vmem>>, vector<1x1x8xf32>
    %32 = vector.shape_cast %31 : vector<1x1x8xf32> to vector<1x8xf32>
    %33 = vector.shape_cast %30 : vector<1x8xf32> to vector<1x1x8xf32>
    tpu.vector_store %arg10[%c0_22, %c0_23, %c0_24], %33 {strides = array<i32>} : memref<1x1x8xf32, #tpu.memory_space<vmem>>, vector<1x1x8xf32>,
    return
  }
  func.func @transform_0(%arg0: i32) -> (i32, i32) {
    %c0_i32 = arith.constant 0 : i32
    %c0_i32_0 = arith.constant 0 : i32
    return %arg0, %c0_i32 : i32, i32
  }
  func.func @transform_1(%arg0: i32) -> (i32, i32) {
    %c0_i32 = arith.constant 0 : i32
    %c0_i32_0 = arith.constant 0 : i32
    return %arg0, %c0_i32 : i32, i32
  }
  func.func @transform_2(%arg0: i32) -> (i32, i32) {
    %c0_i32 = arith.constant 0 : i32
    %c0_i32_0 = arith.constant 0 : i32
    %c0_i32_1 = arith.constant 0 : i32
    return %c0_i32, %c0_i32_0 : i32, i32
  }
  func.func @transform_3(%arg0: i32) -> (i32, i32) {
    %c0_i32 = arith.constant 0 : i32
    %c0_i32_0 = arith.constant 0 : i32
    %c0_i32_1 = arith.constant 0 : i32
    return %c0_i32, %c0_i32_0 : i32, i32
  }
  func.func @transform_4(%arg0: i32) -> (i32, i32) {
    %c0_i32 = arith.constant 0 : i32
    %c0_i32_0 = arith.constant 0 : i32
    %c0_i32_1 = arith.constant 0 : i32
    return %c0_i32, %c0_i32_0 : i32, i32
  }
  func.func @transform_5(%arg0: i32) -> (i32, i32) {
    %c0_i32 = arith.constant 0 : i32
    %c0_i32_0 = arith.constant 0 : i32
    %c0_i32_1 = arith.constant 0 : i32
    return %c0_i32, %c0_i32_0 : i32, i32
  }
  func.func @transform_6(%arg0: i32) -> (i32, i32) {
    %c0_i32 = arith.constant 0 : i32
    %c0_i32_0 = arith.constant 0 : i32
    %c0_i32_1 = arith.constant 0 : i32
    return %c0_i32, %c0_i32_0 : i32, i32
  }
  func.func @transform_7(%arg0: i32) -> (i32, i32) {
    %c0_i32 = arith.constant 0 : i32
    %c0_i32_0 = arith.constant 0 : i32
    %c0_i32_1 = arith.constant 0 : i32
    return %c0_i32, %c0_i32_0 : i32, i32
  }
  func.func @transform_8(%arg0: i32) -> (i32, i32) {
    %c0_i32 = arith.constant 0 : i32
    %c0_i32_0 = arith.constant 0 : i32
    %c0_i32_1 = arith.constant 0 : i32
    return %c0_i32, %c0_i32_0 : i32, i32
  }
  func.func @transform_9(%arg0: i32) -> (i32, i32, i32) {
    %c0_i32 = arith.constant 0 : i32
    %c0_i32_0 = arith.constant 0 : i32
    %c0_i32_1 = arith.constant 0 : i32
    return %arg0, %c0_i32, %c0_i32_0 : i32, i32, i32
  }
}

</mosaic_0001>

<llo_original>
// kernel: tpu_custom_call.1
$region0: #{tpu_custom_call.1}
  #allocation0 [shape = 'u32[]', space=smem, size = 0x4, offset = 0x4, fixed_abs, tag = 'smem constant byte address 0x4 - core index']
  #allocation1 [shape = 'u32[72,128]{1,0:T(1,128)}', space=vmem, size = 0x9000, scoped, tag = 'internal scratch']
  #allocation2 [shape = 'f32[1,1]{1,0:T(1,128)S(1)}', space=vmem, size = 0x200, scoped, tag = 'scoped memory for tpu_custom_call.1']
  %s0 = inlined_call_operand.hbm [shape: f32[8,16], index: 0, kind: input, shape index: {}]
  %s1 = inlined_call_operand.hbm [shape: f32[8,8], index: 1, kind: input, shape index: {}]
  %s2 = inlined_call_operand.hbm [shape: bf16[16,256], index: 2, kind: input, shape index: {}]
  %s3 = inlined_call_operand.hbm [shape: bf16[8,256], index: 3, kind: input, shape index: {}]
  %s4 = inlined_call_operand.vmem [shape: f32[1,256], index: 4, kind: input, shape index: {}]
  %s5 = inlined_call_operand.hbm [shape: bf16[256,256], index: 5, kind: input, shape index: {}]
  %s6 = inlined_call_operand.vmem [shape: f32[1,256], index: 6, kind: input, shape index: {}]
  %s7 = inlined_call_operand.vmem [shape: f32[1,256], index: 7, kind: input, shape index: {}]
  %s8 = inlined_call_operand.<no memory space> [shape: f32[1,1], index: 8, kind: input, shape index: {}]
  %s9 = inlined_call_operand.hbm [shape: f32[1,1,8], index: 9, kind: output, shape index: {}]
  %s10 = sld [smem:[#allocation0]]
  $region66: #{tpu_custom_call.1} parent=0
    _
  %s12 = ssub.s32 1, %s10
  %s13 = scalar_select 0, %s12, %s10
  %v14 = vstv %s8
  %15 = vst [vmem:[#allocation2] sm:$0x1] %v14
  $region1: #{tpu_custom_call.1} parent=0
    #allocation3 [shape = 'u8[4096]{0}', space=vmem, size = 0x1000, scoped, tag = 'input window, operand 0, single buffered']
    #allocation4 [shape = 's32[1]{0}', space=sflag, size = 0x4, scoped, tag = 'scoped memory for tpu_custom_call.1']
    #allocation5 [shape = 's32[1]{0}', space=sflag, size = 0x4, scoped, tag = 'scoped memory for tpu_custom_call.1']
    #allocation6 [shape = 'u8[4096]{0}', space=vmem, size = 0x1000, scoped, tag = 'input window, operand 1, single buffered']
    #allocation7 [shape = 's32[1]{0}', space=sflag, size = 0x4, scoped, tag = 'scoped memory for tpu_custom_call.1']
    #allocation8 [shape = 'u8[8192]{0}', space=vmem, size = 0x2000, scoped, tag = 'input window, operand 2, single buffered']
    #allocation9 [shape = 'u8[4096]{0}', space=vmem, size = 0x1000, scoped, tag = 'input window, operand 3, single buffered']
    #allocation10 [shape = 's32[1]{0}', space=sflag, size = 0x4, scoped, tag = 'scoped memory for tpu_custom_call.1']
    #allocation11 [shape = 'u8[131072]{0}', space=vmem, size = 0x20000, scoped, tag = 'input window, operand 5, single buffered']
    #allocation12 [shape = 'u8[512]{0}', space=vmem, size = 0x400, scoped, tag = 'output window, operand 0, single buffered']
    %16 = vsyncpa [#allocation4], 0
    %17 = vsyncpa [#allocation7], 0
    %18 = vsyncpa [#allocation10], 0
    %19 = vsyncpa [#allocation5], 0
    // Predicated region
    $region2: #{tpu_custom_call.1} parent=1 // pred_check
      _
    $region3: #{tpu_custom_call.1} parent=1 // pred_check_branch
      %21 = sbr.rel (0) target = $region5
    $region4: #{tpu_custom_call.1} parent=1 // pred_region
      %23 = vsyncadd [#allocation4], 0
      %s25 = sshll.u32 %s0, 4
      %s26 = int_to_ptr.hbm [resolvable:$true] %s25
      %s27 = sshll.u32 [#allocation3], 4
      %s28 = int_to_ptr.vmem [resolvable:$true] %s27
      %30 = dma.hbm_to_vmem [thread:$0]  %s26, 128, %s28, [#allocation4]
    $region5: #{tpu_custom_call.1} parent=1 // pred_fallthru
      _
    // Predicated region
    $region6: #{tpu_custom_call.1} parent=1 // pred_check
      _
    $region7: #{tpu_custom_call.1} parent=1 // pred_check_branch
      %32 = sbr.rel (0) target = $region9
    $region8: #{tpu_custom_call.1} parent=1 // pred_region
      %34 = vsyncadd [#allocation7], 0
      %s36 = sshll.u32 %s1, 4
      %s37 = int_to_ptr.hbm [resolvable:$true] %s36
      %s38 = sshll.u32 [#allocation6], 4
      %s39 = int_to_ptr.vmem [resolvable:$true] %s38
      %41 = dma.hbm_to_vmem [thread:$0]  %s37, 128, %s39, [#allocation7]
    $region9: #{tpu_custom_call.1} parent=1 // pred_fallthru
      _
    // Predicated region
    $region10: #{tpu_custom_call.1} parent=1 // pred_check
      _
    $region11: #{tpu_custom_call.1} parent=1 // pred_check_branch
      %43 = sbr.rel (0) target = $region13
    $region12: #{tpu_custom_call.1} parent=1 // pred_region
      %45 = vsyncadd [#allocation7], 0
      %s46 = sshll.u32 %s2, 4
      %s47 = int_to_ptr.hbm [resolvable:$true] %s46
      %s48 = sshll.u32 [#allocation8], 4
      %s49 = int_to_ptr.vmem [resolvable:$true] %s48
      %54 = dma.hbm_to_vmem [thread:$0]  %s47, 256, %s49, [#allocation7], 128, 128, 8
    $region13: #{tpu_custom_call.1} parent=1 // pred_fallthru
      _
    // Predicated region
    $region14: #{tpu_custom_call.1} parent=1 // pred_check
      _
    $region15: #{tpu_custom_call.1} parent=1 // pred_check_branch
      %56 = sbr.rel (0) target = $region17
    $region16: #{tpu_custom_call.1} parent=1 // pred_region
      %58 = vsyncadd [#allocation10], 0
      %s60 = sshll.u32 %s3, 4
      %s61 = int_to_ptr.hbm [resolvable:$true] %s60
      %s62 = sshll.u32 [#allocation9], 4
      %s63 = int_to_ptr.vmem [resolvable:$true] %s62
      %65 = dma.hbm_to_vmem [thread:$0]  %s61, 128, %s63, [#allocation10]
    $region17: #{tpu_custom_call.1} parent=1 // pred_fallthru
      _
    // Predicated region
    $region18: #{tpu_custom_call.1} parent=1 // pred_check
      _
    $region19: #{tpu_custom_call.1} parent=1 // pred_check_branch
      %67 = sbr.rel (0) target = $region21
    $region20: #{tpu_custom_call.1} parent=1 // pred_region
      _
    $region21: #{tpu_custom_call.1} parent=1 // pred_fallthru
      _
    // Predicated region
    $region22: #{tpu_custom_call.1} parent=1 // pred_check
      _
    $region23: #{tpu_custom_call.1} parent=1 // pred_check_branch
      %69 = sbr.rel (0) target = $region25
    $region24: #{tpu_custom_call.1} parent=1 // pred_region
      %71 = vsyncadd [#allocation10], 0
      %s72 = sshll.u32 %s5, 4
      %s73 = int_to_ptr.hbm [resolvable:$true] %s72
      %s74 = sshll.u32 [#allocation11], 4
      %s75 = int_to_ptr.vmem [resolvable:$true] %s74
      %80 = dma.hbm_to_vmem [thread:$0]  %s73, 4096, %s75, [#allocation10], 128, 128, 8
    $region25: #{tpu_custom_call.1} parent=1 // pred_fallthru
      _
    // Predicated region
    $region26: #{tpu_custom_call.1} parent=1 // pred_check
      _
    $region27: #{tpu_custom_call.1} parent=1 // pred_check_branch
      %82 = sbr.rel (0) target = $region29
    $region28: #{tpu_custom_call.1} parent=1 // pred_region
      _
    $region29: #{tpu_custom_call.1} parent=1 // pred_fallthru
      _
    // Predicated region
    $region30: #{tpu_custom_call.1} parent=1 // pred_check
      _
    $region31: #{tpu_custom_call.1} parent=1 // pred_check_branch
      %84 = sbr.rel (0) target = $region33
    $region32: #{tpu_custom_call.1} parent=1 // pred_region
      _
    $region33: #{tpu_custom_call.1} parent=1 // pred_fallthru
      _
    // Predicated region
    $region34: #{tpu_custom_call.1} parent=1 // pred_check
      _
    $region35: #{tpu_custom_call.1} parent=1 // pred_check_branch
      %86 = sbr.rel (0) target = $region37
    $region36: #{tpu_custom_call.1} parent=1 // pred_region
      _
    $region37: #{tpu_custom_call.1} parent=1 // pred_fallthru
      _
    // Predicated region
    $region38: #{tpu_custom_call.1} parent=1 // pred_check
      _
    $region39: #{tpu_custom_call.1} parent=1 // pred_check_branch
      %88 = sbr.rel (0) target = $region41
    $region40: #{tpu_custom_call.1} parent=1 // pred_region
      %90 = dma.done [#allocation4], 128
    $region41: #{tpu_custom_call.1} parent=1 // pred_fallthru
      _
    // Predicated region
    $region42: #{tpu_custom_call.1} parent=1 // pred_check
      _
    $region43: #{tpu_custom_call.1} parent=1 // pred_check_branch
      %92 = sbr.rel (0) target = $region45
    $region44: #{tpu_custom_call.1} parent=1 // pred_region
      %94 = dma.done [#allocation7], 128
    $region45: #{tpu_custom_call.1} parent=1 // pred_fallthru
      _
    // Predicated region
    $region46: #{tpu_custom_call.1} parent=1 // pred_check
      _
    $region47: #{tpu_custom_call.1} parent=1 // pred_check_branch
      %96 = sbr.rel (0) target = $region49
    $region48: #{tpu_custom_call.1} parent=1 // pred_region
      %98 = dma.done [#allocation7], 256
    $region49: #{tpu_custom_call.1} parent=1 // pred_fallthru
      _
    // Predicated region
    $region50: #{tpu_custom_call.1} parent=1 // pred_check
      _
    $region51: #{tpu_custom_call.1} parent=1 // pred_check_branch
      %100 = sbr.rel (0) target = $region53
    $region52: #{tpu_custom_call.1} parent=1 // pred_region
      %102 = dma.done [#allocation10], 128
    $region53: #{tpu_custom_call.1} parent=1 // pred_fallthru
      _
    // Predicated region
    $region54: #{tpu_custom_call.1} parent=1 // pred_check
      _
    $region55: #{tpu_custom_call.1} parent=1 // pred_check_branch
      %104 = sbr.rel (0) target = $region57
    $region56: #{tpu_custom_call.1} parent=1 // pred_region
      %106 = dma.done [#allocation10], 4096
    $region57: #{tpu_custom_call.1} parent=1 // pred_fallthru
      _
    %v108 = vld [vmem:[#allocation3] sm:$0xff]
    %v109 = vpack.c.bf16 %v108, %v108
    %v110 = vld [vmem:[#allocation8] sm:$0xff]
    %v111 = vld [vmem:[#allocation8 + $0x8] sm:$0xff]
    %v112 = vld [vmem:[#allocation6] sm:$0xff]
    %v113 = vpack.c.bf16 %v112, %v112
    %v114 = vld [vmem:[#allocation9] sm:$0xff]
    %v116 = vunpack.c.l.b16 %v114
    %v117 = vunpack.c.h.b16 %v114
    %v118 = vpack.c.b16 %v116, %v116
    %v119 = vpack.c.b16 %v117, %v117
    %vm120 = vcmask 64512
    %v122 = vsel %vm120, %v113, 0
    %vm124 = vcmask 1043456
    %v126 = vsel %vm124, %v118, 0
    %v129 = vsel %vm124, %v119, 0
    %131 = vmatpush.bf16.msra.mxu0 0
    %132 = vmatpush.bf16.msra.mxu0 0
    %133 = vmatpush.bf16.msra.mxu0 0
    %134 = vmatpush.bf16.msra.mxu0 0
    %135 = vmatpush.bf16.msra.mxu0 0
    %136 = vmatpush.bf16.msra.mxu0 0
    %137 = vmatpush.bf16.msra.mxu0 0
    %138 = vmatpush.bf16.msra.mxu0 %v126
    %139 = vmatmul.bf16.gmra.mxu0 %v122
    %v140 = vpop.f32.mrf.mxu0
    %v141 = vadd.f32 0.0, %v140
    %v142 = vpop.f32.mrf.mxu0
    %143 = vdwg.mxu0
    %144 = vmatpush.bf16.msra.mxu0 0
    %145 = vmatpush.bf16.msra.mxu0 0
    %146 = vmatpush.bf16.msra.mxu0 0
    %147 = vmatpush.bf16.msra.mxu0 0
    %148 = vmatpush.bf16.msra.mxu0 0
    %149 = vmatpush.bf16.msra.mxu0 0
    %150 = vmatpush.bf16.msra.mxu0 0
    %151 = vmatpush.bf16.msra.mxu0 %v129
    %152 = vmatmul.bf16.gmra.mxu0 %v122
    %v153 = vpop.f32.mrf.mxu0
    %v154 = vadd.f32 0.0, %v153
    %v155 = vpop.f32.mrf.mxu0
    %156 = vdwg.mxu0
    %v159 = vunpack.c.l.b16 %v110
    %v160 = vunpack.c.h.b16 %v110
    %v161 = vunpack.c.l.b16 %v111
    %v162 = vunpack.c.h.b16 %v111
    %v163 = vpack.c.b16 %v161, %v159
    %v164 = vpack.c.b16 %v162, %v160
    %vm167 = vcmask 130048
    %v169 = vsel %vm167, %v109, 0
    %171 = vmatpush.bf16.msra.mxu0 0
    %172 = vmatpush.bf16.msra.mxu0 0
    %173 = vmatpush.bf16.msra.mxu0 0
    %174 = vmatpush.bf16.msra.mxu0 0
    %175 = vmatpush.bf16.msra.mxu0 0
    %176 = vmatpush.bf16.msra.mxu0 0
    %177 = vmatpush.bf16.msra.mxu0 0
    %178 = vmatpush.bf16.msra.mxu0 %v163
    %179 = vmatmul.bf16.gmra.mxu0 %v169
    %v180 = vpop.f32.mrf.mxu0
    %v181 = vadd.f32 %v141, %v180
    %v182 = vpop.f32.mrf.mxu0
    %183 = vdwg.mxu0
    %184 = vmatpush.bf16.msra.mxu0 0
    %185 = vmatpush.bf16.msra.mxu0 0
    %186 = vmatpush.bf16.msra.mxu0 0
    %187 = vmatpush.bf16.msra.mxu0 0
    %188 = vmatpush.bf16.msra.mxu0 0
    %189 = vmatpush.bf16.msra.mxu0 0
    %190 = vmatpush.bf16.msra.mxu0 0
    %191 = vmatpush.bf16.msra.mxu0 %v164
    %192 = vmatmul.bf16.gmra.mxu0 %v169
    %v193 = vpop.f32.mrf.mxu0
    %v194 = vadd.f32 %v154, %v193
    %v195 = vpop.f32.mrf.mxu0
    %196 = vdwg.mxu0
    %v197 = vld [vmem:[%s4] sm:$0x3]
    %v199 = vperm.slane %v197, 0
    %v200 = vperm.slane %v197, 1
    %v203 = vadd.f32 %v181, %v199
    %v204 = vadd.f32 %v194, %v200
    %v205 = vmax.f32 %v203, 0.0
    %v206 = vmax.f32 %v204, 0.0
    %v207 = vpack.c.bf16 %v205, %v205
    %v208 = vpack.c.bf16 %v206, %v206
    %v209 = vld [vmem:[#allocation11] sm:$0xff]
    %v210 = vld [vmem:[#allocation11 + $0x8] sm:$0xff]
    %v211 = vld [vmem:[#allocation11 + $0x10] sm:$0xff]
    %v212 = vld [vmem:[#allocation11 + $0x18] sm:$0xff]
    %v213 = vld [vmem:[#allocation11 + $0x20] sm:$0xff]
    %v214 = vld [vmem:[#allocation11 + $0x28] sm:$0xff]
    %v215 = vld [vmem:[#allocation11 + $0x30] sm:$0xff]
    %v216 = vld [vmem:[#allocation11 + $0x38] sm:$0xff]
    %v217 = vld [vmem:[#allocation11 + $0x40] sm:$0xff]
    %v218 = vld [vmem:[#allocation11 + $0x48] sm:$0xff]
    %v219 = vld [vmem:[#allocation11 + $0x50] sm:$0xff]
    %v220 = vld [vmem:[#allocation11 + $0x58] sm:$0xff]
    %v221 = vld [vmem:[#allocation11 + $0x60] sm:$0xff]
    %v222 = vld [vmem:[#allocation11 + $0x68] sm:$0xff]
    %v223 = vld [vmem:[#allocation11 + $0x70] sm:$0xff]
    %v224 = vld [vmem:[#allocation11 + $0x78] sm:$0xff]
    %v225 = vld [vmem:[#allocation11 + $0x80] sm:$0xff]
    %v226 = vld [vmem:[#allocation11 + $0x88] sm:$0xff]
    %v227 = vld [vmem:[#allocation11 + $0x90] sm:$0xff]
    %v228 = vld [vmem:[#allocation11 + $0x98] sm:$0xff]
    %v229 = vld [vmem:[#allocation11 + $0xa0] sm:$0xff]
    %v230 = vld [vmem:[#allocation11 + $0xa8] sm:$0xff]
    %v231 = vld [vmem:[#allocation11 + $0xb0] sm:$0xff]
    %v232 = vld [vmem:[#allocation11 + $0xb8] sm:$0xff]
    %v233 = vld [vmem:[#allocation11 + $0xc0] sm:$0xff]
    %v234 = vld [vmem:[#allocation11 + $0xc8] sm:$0xff]
    %v235 = vld [vmem:[#allocation11 + $0xd0] sm:$0xff]
    %v236 = vld [vmem:[#allocation11 + $0xd8] sm:$0xff]
    %v237 = vld [vmem:[#allocation11 + $0xe0] sm:$0xff]
    %v238 = vld [vmem:[#allocation11 + $0xe8] sm:$0xff]
    %v239 = vld [vmem:[#allocation11 + $0xf0] sm:$0xff]
    %v240 = vld [vmem:[#allocation11 + $0xf8] sm:$0xff]
    %v241 = vld [vmem:[%s6] sm:$0x3]
    %v243 = vperm.slane %v241, 0
    %v244 = vperm.slane %v241, 1
    %v279 = vunpack.c.l.b16 %v209
    %v280 = vunpack.c.h.b16 %v209
    %v281 = vunpack.c.l.b16 %v210
    %v282 = vunpack.c.h.b16 %v210
    %v283 = vunpack.c.l.b16 %v211
    %v284 = vunpack.c.h.b16 %v211
    %v285 = vunpack.c.l.b16 %v212
    %v286 = vunpack.c.h.b16 %v212
    %v287 = vunpack.c.l.b16 %v213
    %v288 = vunpack.c.h.b16 %v213
    %v289 = vunpack.c.l.b16 %v214
    %v290 = vunpack.c.h.b16 %v214
    %v291 = vunpack.c.l.b16 %v215
    %v292 = vunpack.c.h.b16 %v215
    %v293 = vunpack.c.l.b16 %v216
    %v294 = vunpack.c.h.b16 %v216
    %v295 = vunpack.c.l.b16 %v217
    %v296 = vunpack.c.h.b16 %v217
    %v297 = vunpack.c.l.b16 %v218
    %v298 = vunpack.c.h.b16 %v218
    %v299 = vunpack.c.l.b16 %v219
    %v300 = vunpack.c.h.b16 %v219
    %v301 = vunpack.c.l.b16 %v220
    %v302 = vunpack.c.h.b16 %v220
    %v303 = vunpack.c.l.b16 %v221
    %v304 = vunpack.c.h.b16 %v221
    %v305 = vunpack.c.l.b16 %v222
    %v306 = vunpack.c.h.b16 %v222
    %v307 = vunpack.c.l.b16 %v223
    %v308 = vunpack.c.h.b16 %v223
    %v309 = vunpack.c.l.b16 %v224
    %v310 = vunpack.c.h.b16 %v224
    %v311 = vunpack.c.l.b16 %v225
    %v312 = vunpack.c.h.b16 %v225
    %v313 = vunpack.c.l.b16 %v226
    %v314 = vunpack.c.h.b16 %v226
    %v315 = vunpack.c.l.b16 %v227
    %v316 = vunpack.c.h.b16 %v227
    %v317 = vunpack.c.l.b16 %v228
    %v318 = vunpack.c.h.b16 %v228
    %v319 = vunpack.c.l.b16 %v229
    %v320 = vunpack.c.h.b16 %v229
    %v321 = vunpack.c.l.b16 %v230
    %v322 = vunpack.c.h.b16 %v230
    %v323 = vunpack.c.l.b16 %v231
    %v324 = vunpack.c.h.b16 %v231
    %v325 = vunpack.c.l.b16 %v232
    %v326 = vunpack.c.h.b16 %v232
    %v327 = vunpack.c.l.b16 %v233
    %v328 = vunpack.c.h.b16 %v233
    %v329 = vunpack.c.l.b16 %v234
    %v330 = vunpack.c.h.b16 %v234
    %v331 = vunpack.c.l.b16 %v235
    %v332 = vunpack.c.h.b16 %v235
    %v333 = vunpack.c.l.b16 %v236
    %v334 = vunpack.c.h.b16 %v236
    %v335 = vunpack.c.l.b16 %v237
    %v336 = vunpack.c.h.b16 %v237
    %v337 = vunpack.c.l.b16 %v238
    %v338 = vunpack.c.h.b16 %v238
    %v339 = vunpack.c.l.b16 %v239
    %v340 = vunpack.c.h.b16 %v239
    %v341 = vunpack.c.l.b16 %v240
    %v342 = vunpack.c.h.b16 %v240
    %v343 = vpack.c.b16 %v281, %v279
    %v344 = vpack.c.b16 %v282, %v280
    %v345 = vpack.c.b16 %v285, %v283
    %v346 = vpack.c.b16 %v286, %v284
    %v347 = vpack.c.b16 %v289, %v287
    %v348 = vpack.c.b16 %v290, %v288
    %v349 = vpack.c.b16 %v293, %v291
    %v350 = vpack.c.b16 %v294, %v292
    %v351 = vpack.c.b16 %v297, %v295
    %v352 = vpack.c.b16 %v298, %v296
    %v353 = vpack.c.b16 %v301, %v299
    %v354 = vpack.c.b16 %v302, %v300
    %v355 = vpack.c.b16 %v305, %v303
    %v356 = vpack.c.b16 %v306, %v304
    %v357 = vpack.c.b16 %v309, %v307
    %v358 = vpack.c.b16 %v310, %v308
    %v359 = vpack.c.b16 %v313, %v311
    %v360 = vpack.c.b16 %v314, %v312
    %v361 = vpack.c.b16 %v317, %v315
    %v362 = vpack.c.b16 %v318, %v316
    %v363 = vpack.c.b16 %v321, %v319
    %v364 = vpack.c.b16 %v322, %v320
    %v365 = vpack.c.b16 %v325, %v323
    %v366 = vpack.c.b16 %v326, %v324
    %v367 = vpack.c.b16 %v329, %v327
    %v368 = vpack.c.b16 %v330, %v328
    %v369 = vpack.c.b16 %v333, %v331
    %v370 = vpack.c.b16 %v334, %v332
    %v371 = vpack.c.b16 %v337, %v335
    %v372 = vpack.c.b16 %v338, %v336
    %v373 = vpack.c.b16 %v341, %v339
    %v374 = vpack.c.b16 %v342, %v340
    %407 = vmatpush.bf16.msra.mxu0 %v357
    %408 = vmatpush.bf16.msra.mxu0 %v355
    %409 = vmatpush.bf16.msra.mxu0 %v353
    %410 = vmatpush.bf16.msra.mxu0 %v351
    %411 = vmatpush.bf16.msra.mxu0 %v349
    %412 = vmatpush.bf16.msra.mxu0 %v347
    %413 = vmatpush.bf16.msra.mxu0 %v345
    %414 = vmatpush.bf16.msra.mxu0 %v343
    %415 = vmatmul.bf16.gmra.mxu0 %v207
    %v416 = vpop.f32.mrf.mxu0
    %v417 = vadd.f32 %v243, %v416
    %v418 = vpop.f32.mrf.mxu0
    %419 = vdwg.mxu0
    %420 = vmatpush.bf16.msra.mxu0 %v373
    %421 = vmatpush.bf16.msra.mxu0 %v371
    %422 = vmatpush.bf16.msra.mxu0 %v369
    %423 = vmatpush.bf16.msra.mxu0 %v367
    %424 = vmatpush.bf16.msra.mxu0 %v365
    %425 = vmatpush.bf16.msra.mxu0 %v363
    %426 = vmatpush.bf16.msra.mxu0 %v361
    %427 = vmatpush.bf16.msra.mxu0 %v359
    %428 = vmatmul.bf16.gmra.mxu0 %v208
    %v429 = vpop.f32.mrf.mxu0
    %v430 = vadd.f32 %v417, %v429
    %v431 = vpop.f32.mrf.mxu0
    %432 = vdwg.mxu0
    %433 = vmatpush.bf16.msra.mxu0 %v358
    %434 = vmatpush.bf16.msra.mxu0 %v356
    %435 = vmatpush.bf16.msra.mxu0 %v354
    %436 = vmatpush.bf16.msra.mxu0 %v352
    %437 = vmatpush.bf16.msra.mxu0 %v350
    %438 = vmatpush.bf16.msra.mxu0 %v348
    %439 = vmatpush.bf16.msra.mxu0 %v346
    %440 = vmatpush.bf16.msra.mxu0 %v344
    %441 = vmatmul.bf16.gmra.mxu0 %v207
    %v442 = vpop.f32.mrf.mxu0
    %v443 = vadd.f32 %v244, %v442
    %v444 = vpop.f32.mrf.mxu0
    %445 = vdwg.mxu0
    %446 = vmatpush.bf16.msra.mxu0 %v374
    %447 = vmatpush.bf16.msra.mxu0 %v372
    %448 = vmatpush.bf16.msra.mxu0 %v370
    %449 = vmatpush.bf16.msra.mxu0 %v368
    %450 = vmatpush.bf16.msra.mxu0 %v366
    %451 = vmatpush.bf16.msra.mxu0 %v364
    %452 = vmatpush.bf16.msra.mxu0 %v362
    %453 = vmatpush.bf16.msra.mxu0 %v360
    %454 = vmatmul.bf16.gmra.mxu0 %v208
    %v455 = vpop.f32.mrf.mxu0
    %v456 = vadd.f32 %v443, %v455
    %v457 = vpop.f32.mrf.mxu0
    %458 = vdwg.mxu0
    %v459 = vmax.f32 %v430, 0.0
    %v460 = vmax.f32 %v456, 0.0
    %v461 = vld [vmem:[%s7] sm:$0x3]
    %v463 = vperm.slane %v461, 0
    %v464 = vperm.slane %v461, 1
    %v467 = vmul.f32 %v459, %v463
    %v468 = vmul.f32 %v460, %v464
    %v469 = vadd.f32 %v467, %v468
    %470 = vadd.xlane.f32.xlu0 %v469
    %v471 = vpop.xlane.xlu0 %470
    %v472 = vld [vmem:[#allocation2] sm:$0x1]
    %v474 = vperm.slane %v472, 0
    %v476 = vadd.f32 %v471, %v474
    %477 = vxpose.xlu0.b32.start [1/16] %v476, 128
    %478 = vxpose.xlu0.b32.cont [2/16] 0.0, 128
    %479 = vxpose.xlu0.b32.cont [3/16] 0.0, 128
    %480 = vxpose.xlu0.b32.cont [4/16] 0.0, 128
    %481 = vxpose.xlu0.b32.cont [5/16] 0.0, 128
    %482 = vxpose.xlu0.b32.cont [6/16] 0.0, 128
    %483 = vxpose.xlu0.b32.cont [7/16] 0.0, 128
    %484 = vxpose.xlu0.b32.cont [8/16] 0.0, 128
    %485 = vxpose.xlu0.b32.cont [9/16] 0.0, 128
    %486 = vxpose.xlu0.b32.cont [10/16] 0.0, 128
    %487 = vxpose.xlu0.b32.cont [11/16] 0.0, 128
    %488 = vxpose.xlu0.b32.cont [12/16] 0.0, 128
    %489 = vxpose.xlu0.b32.cont [13/16] 0.0, 128
    %490 = vxpose.xlu0.b32.cont [14/16] 0.0, 128
    %491 = vxpose.xlu0.b32.cont [15/16] 0.0, 128
    %492 = vxpose.xlu0.b32.end [16/16] 0.0, 128
    %v493 = vpop.trf.xlu0
    %v494 = vpop.trf.xlu0
    %v495 = vpop.trf.xlu0
    %v496 = vpop.trf.xlu0
    %v497 = vpop.trf.xlu0
    %v498 = vpop.trf.xlu0
    %v499 = vpop.trf.xlu0
    %v500 = vpop.trf.xlu0
    %v501 = vpop.trf.xlu0
    %v502 = vpop.trf.xlu0
    %v503 = vpop.trf.xlu0
    %v504 = vpop.trf.xlu0
    %v505 = vpop.trf.xlu0
    %v506 = vpop.trf.xlu0
    %v507 = vpop.trf.xlu0
    %v508 = vpop.trf.xlu0
    %vm509 = vcmask 57344
    %510 = vst.msk [vmem:[#allocation12] sm:$0x1] %vm509, %v493
    // Predicated region
    $region58: #{tpu_custom_call.1} parent=1 // pred_check
      _
    $region59: #{tpu_custom_call.1} parent=1 // pred_check_branch
      %512 = sbr.rel (0) target = $region61
    $region60: #{tpu_custom_call.1} parent=1 // pred_region
      %514 = vsyncadd [#allocation5], 0
      %s516 = sshll.u32 [#allocation12], 4
      %s517 = int_to_ptr.vmem [resolvable:$true] %s516
      %s518 = sshll.u32 %s9, 4
      %s519 = int_to_ptr.hbm [resolvable:$true] %s518
      %521 = dma.vmem_to_hbm [thread:$0]  %s517, 16, %s519, [#allocation5]
    $region61: #{tpu_custom_call.1} parent=1 // pred_fallthru
      _
    // Predicated region
    $region62: #{tpu_custom_call.1} parent=1 // pred_check
      _
    $region63: #{tpu_custom_call.1} parent=1 // pred_check_branch
      %523 = sbr.rel (0) target = $region65
    $region64: #{tpu_custom_call.1} parent=1 // pred_region
      %525 = dma.done [#allocation5], 16
    $region65: #{tpu_custom_call.1} parent=1 // pred_fallthru
      _
    %526 = vsyncpa [#allocation4], 1
    %527 = vsyncpa [#allocation7], 1
    %528 = vsyncpa [#allocation10], 1
    %529 = vsyncpa [#allocation5], 1

</llo_original>
